<compile_context>
chip_gen: v7x
topology: tpu7x:2x2x1
jax: 0.10.0
libtpu: 0.0.40
codegen_flags: <defaults>
</compile_context>

<pallas_src>
import functools

import jax
import jax.numpy as jnp
from jax.experimental import pallas as pl
from jax.experimental.pallas import tpu as pltpu


def _round_up(x, m):
    return (x + m - 1) // m * m


def _log_sigmoid(x):
    # numerically stable log(sigmoid(x)) = min(x, 0) - log(1 + exp(-|x|))
    return jnp.minimum(x, 0.0) - jnp.log(1.0 + jnp.exp(-jnp.abs(x)))


# ---------------------------------------------------------------------------
# Path 1: small vocab — full tables resident in VMEM, one-hot gather on MXU.
# ---------------------------------------------------------------------------
def _skipgram_dense_kernel(cidx_ref, tidx_ref, nidx_ref,      # (TB,1),(TB,1),(TB,K) int32
                           emb_v_ref, emb_u_ref,               # (V, Dp) resident in VMEM
                           out_ref,                            # (1, 8, 128) per-chunk partial
                           *, true_b):
    tb = cidx_ref.shape[0]
    k = nidx_ref.shape[1]
    v = emb_v_ref.shape[0]
    g = pl.program_id(0)
    base = g * tb

    tdt = emb_v_ref.dtype
    vocab_iota = jax.lax.broadcasted_iota(jnp.int32, (tb, v), 1)

    # One-hot gathers via MXU: one matmul for the centers, one for the targets,
    # and one for the *summed* negatives (count matrix), since the reference
    # sums the K negative dot products before the log-sigmoid.
    c_onehot = (cidx_ref[...] == vocab_iota).astype(tdt)                 # (tb, v)
    t_onehot = (tidx_ref[...] == vocab_iota).astype(tdt)                 # (tb, v)
    ncount = jnp.zeros((tb, v), tdt)
    for kk in range(k):                                                  # K is small & static
        ncount = ncount + (nidx_ref[:, kk:kk + 1] == vocab_iota).astype(tdt)

    center = jnp.dot(c_onehot, emb_v_ref[...], preferred_element_type=jnp.float32)  # (tb, Dp)
    target = jnp.dot(t_onehot, emb_u_ref[...], preferred_element_type=jnp.float32)  # (tb, Dp)
    negsum = jnp.dot(ncount, emb_u_ref[...], preferred_element_type=jnp.float32)    # (tb, Dp)

    pos_score = jnp.sum(target * center, axis=-1, keepdims=True)        # (tb, 1)
    neg_score = -jnp.sum(negsum * center, axis=-1, keepdims=True)       # (tb, 1)

    lp = _log_sigmoid(pos_score)
    ln = _log_sigmoid(neg_score)

    # Mask padded batch rows.
    rows = base + jax.lax.broadcasted_iota(jnp.int32, (tb, 1), 0)
    contrib = jnp.where(rows < true_b, lp + ln, 0.0)                     # (tb, 1)
    chunk = jnp.sum(contrib, axis=0, keepdims=True)                      # (1, 1)

    # Lane-dense per-chunk partial; wrapper reads [g, 0, 0] and reduces.
    out_ref[...] = jnp.broadcast_to(chunk.reshape(1, 1, 1), out_ref.shape)


# ---------------------------------------------------------------------------
# Path 2: large vocab — tables stay in HBM, per-row DMA gather into VMEM.
# ---------------------------------------------------------------------------
def _skipgram_gather_kernel(cidx_ref, tidx_ref, nidx_ref,     # SMEM scalar-prefetch (int32)
                            emb_v_hbm, emb_u_hbm,              # (V, Dp) tables, HBM (pl.ANY)
                            out_ref,                           # (1, 8, 128) per-chunk partial
                            cbuf, ubuf, sem,                   # VMEM scratch + DMA sems
                            *, true_b):
    tb = cbuf.shape[0]            # rows per chunk
    k = ubuf.shape[0] - 1         # negatives per row (ubuf row 0 = target)
    g = pl.program_id(0)
    base = g * tb

    # ---- Issue every row gather of this chunk before waiting on any of them.
    # All scalar index reads happen before any wait (sst->sld forwarding).
    for i in range(tb):                                        # static -> unrolled
        ci = cidx_ref[base + i]
        pltpu.make_async_copy(emb_v_hbm.at[pl.ds(ci, 1), :],
                              cbuf.at[pl.ds(i, 1), :],
                              sem.at[0]).start()
    for i in range(tb):
        ti = tidx_ref[base + i]
        pltpu.make_async_copy(emb_u_hbm.at[pl.ds(ti, 1), :],
                              ubuf.at[0, pl.ds(i, 1), :],
                              sem.at[1]).start()
        for kk in range(k):
            ni = nidx_ref[(base + i) * k + kk]
            pltpu.make_async_copy(emb_u_hbm.at[pl.ds(ni, 1), :],
                                  ubuf.at[kk + 1, pl.ds(i, 1), :],
                                  sem.at[1]).start()

    # ---- Aggregate waits: DMA semaphores count transferred bytes, so one
    # full-slab-sized descriptor per destination releases all the row copies
    # that target it (tb rows for cbuf, tb rows per ubuf slab).
    pltpu.make_async_copy(emb_v_hbm.at[pl.ds(0, tb), :], cbuf, sem.at[0]).wait()
    for j in range(k + 1):
        pltpu.make_async_copy(emb_u_hbm.at[pl.ds(0, tb), :], ubuf.at[j], sem.at[1]).wait()

    # ---- Fused score math for target + all K negatives in one pass.
    center = cbuf[...].astype(jnp.float32)                     # (tb, Dp)
    urows = ubuf[...].astype(jnp.float32)                      # (k+1, tb, Dp)
    dots = jnp.sum(urows * center[None, :, :], axis=-1)        # (k+1, tb)

    pos_score = dots[0:1, :]                                   # (1, tb)
    neg_score = -jnp.sum(dots[1:, :], axis=0, keepdims=True)   # (1, tb)

    lp = _log_sigmoid(pos_score)
    ln = _log_sigmoid(neg_score)

    cols = base + jax.lax.broadcasted_iota(jnp.int32, (1, tb), 1)
    contrib = jnp.where(cols < true_b, lp + ln, 0.0)            # (1, tb)
    chunk = jnp.sum(contrib, axis=1, keepdims=True)             # (1, 1)

    out_ref[...] = jnp.broadcast_to(chunk.reshape(1, 1, 1), out_ref.shape)


# ---------------------------------------------------------------------------
# Wrapper
# ---------------------------------------------------------------------------
def skipgram_forward(center_words, target_words, negative_words, emb_v, emb_u,
                     *, block_b=128, force_gather=False,
                     dense_vmem_budget=24 * 1024 * 1024):
    """center_words:(B,), target_words:(B,), negative_words:(B,K), emb_*:(V,D)."""
    B = int(center_words.shape[0])
    K = int(negative_words.shape[1])
    V, D = (int(s) for s in emb_v.shape)

    # Pad the feature dim to a multiple of 128 lanes (zero columns do not
    # change any dot product): full lane utilization + 512B-per-row DMAs.
    Dp = _round_up(D, 128)
    if Dp != D:
        emb_v = jnp.pad(emb_v, ((0, 0), (0, Dp - D)))
        emb_u = jnp.pad(emb_u, ((0, 0), (0, Dp - D)))

    # Batch chunk size: large (default 128) but a multiple of 8 and <= padded B.
    TB = max(8, min(_round_up(block_b, 8), _round_up(B, 8)))
    G = -(-B // TB)
    Bp = G * TB

    center = jnp.pad(center_words.astype(jnp.int32), (0, Bp - B))
    target = jnp.pad(target_words.astype(jnp.int32), (0, Bp - B))
    neg = jnp.pad(negative_words.astype(jnp.int32), ((0, Bp - B), (0, 0)))

    itemsize = jnp.dtype(emb_v.dtype).itemsize
    # Estimate: tables (possibly double-buffered by the pipeline) + one-hot temps.
    dense_est = 2 * 2 * V * Dp * itemsize + 4 * TB * V * 4
    use_dense = (not force_gather) and dense_est <= dense_vmem_budget

    if use_dense:
        out = pl.pallas_call(
            functools.partial(_skipgram_dense_kernel, true_b=B),
            out_shape=jax.ShapeDtypeStruct((G, 8, 128), jnp.float32),
            grid=(G,),
            in_specs=[
                pl.BlockSpec((TB, 1), lambda g: (g, 0)),
                pl.BlockSpec((TB, 1), lambda g: (g, 0)),
                pl.BlockSpec((TB, K), lambda g: (g, 0)),
                pl.BlockSpec((V, Dp), lambda g: (0, 0)),   # full table, resident in VMEM
                pl.BlockSpec((V, Dp), lambda g: (0, 0)),
            ],
            out_specs=pl.BlockSpec((1, 8, 128), lambda g: (g, 0, 0)),
            compiler_params=pltpu.CompilerParams(
                dimension_semantics=("parallel",),
                vmem_limit_bytes=48 * 1024 * 1024),
        )(center.reshape(Bp, 1), target.reshape(Bp, 1), neg, emb_v, emb_u)
    else:
        assert V >= TB, "row-gather path expects vocab_size >= batch tile"
        grid_spec = pltpu.PrefetchScalarGridSpec(
            num_scalar_prefetch=3,                     # center / target / negatives -> SMEM
            grid=(G,),
            in_specs=[
                pl.BlockSpec(memory_space=pl.ANY),     # emb_v stays in HBM
                pl.BlockSpec(memory_space=pl.ANY),     # emb_u stays in HBM
            ],
            out_specs=pl.BlockSpec((1, 8, 128), lambda g, c, t, n: (g, 0, 0)),
            scratch_shapes=[
                pltpu.VMEM((TB, Dp), emb_v.dtype),         # gathered center rows
                pltpu.VMEM((K + 1, TB, Dp), emb_u.dtype),  # target (slab 0) + K negatives
                pltpu.SemaphoreType.DMA((2,)),             # one sem per destination buffer
            ],
        )
        out = pl.pallas_call(
            functools.partial(_skipgram_gather_kernel, true_b=B),
            out_shape=jax.ShapeDtypeStruct((G, 8, 128), jnp.float32),
            grid_spec=grid_spec,
            compiler_params=pltpu.CompilerParams(
                dimension_semantics=("parallel",),
                vmem_limit_bytes=32 * 1024 * 1024),
        )(center, target, neg.reshape(-1), emb_v, emb_u)

    # torch: (B,1)+(B,) broadcasts to (B,B); -mean == -(sum(lp)+sum(ln))/B
    total = jnp.sum(out[:, 0, 0])
    return -(total / jnp.float32(B))


def _reference_forward(center_words, target_words, negative_words, emb_v, emb_u):
    # Pure-JAX transcription of the PyTorch forward (verification only).
    c = emb_v[center_words][:, None, :]                  # (B, 1, D)
    t = emb_u[target_words][:, None, :]                  # (B, 1, D)
    n = -emb_u[negative_words]                           # (B, K, D)
    ct = jnp.swapaxes(c, 1, 2)                           # (B, D, 1)
    pos = jnp.matmul(t, ct)[:, :, 0]                     # (B, 1)
    negs = jnp.sum(jnp.matmul(n, ct)[:, :, 0], axis=1)   # (B,)
    loss = _log_sigmoid(pos) + _log_sigmoid(negs)        # broadcasts to (B, B)
    return -jnp.mean(loss)


if __name__ == "__main__":
    key = jax.random.PRNGKey(0)

    # ---- Test 1: small vocab -> dense (tables-in-VMEM) fast path ----------
    V1, D1, B1, K1 = 128, 32, 10, 5
    k_w, k_c, k_t, k_n, key = jax.random.split(key, 5)
    # Deterministic stand-in for the GloVe-initialized matrix loaded into both tables.
    w1 = 0.6 * jax.random.normal(k_w, (V1, D1), dtype=jnp.float32)
    c1 = jax.random.randint(k_c, (B1,), 0, V1, dtype=jnp.int32)
    t1 = jax.random.randint(k_t, (B1,), 0, V1, dtype=jnp.int32)
    n1 = jax.random.randint(k_n, (B1, K1), 0, V1, dtype=jnp.int32)

    got1 = jax.block_until_ready(skipgram_forward(c1, t1, n1, w1, w1))
    ref1 = _reference_forward(c1, t1, n1, w1, w1)
    assert jnp.allclose(got1, ref1, rtol=1e-4, atol=1e-4), (got1, ref1)

    # ---- Test 2: force the HBM row-gather path (multi-chunk + masking) ----
    V2, D2, B2, K2 = 512, 32, 12, 3
    k_w, k_c, k_t, k_n, key = jax.random.split(key, 5)
    w2 = 0.6 * jax.random.normal(k_w, (V2, D2), dtype=jnp.float32)
    c2 = jax.random.randint(k_c, (B2,), 0, V2, dtype=jnp.int32)
    t2 = jax.random.randint(k_t, (B2,), 0, V2, dtype=jnp.int32)
    n2 = jax.random.randint(k_n, (B2, K2), 0, V2, dtype=jnp.int32)

    got2 = jax.block_until_ready(
        skipgram_forward(c2, t2, n2, w2, w2, block_b=8, force_gather=True))
    ref2 = _reference_forward(c2, t2, n2, w2, w2)
    assert jnp.allclose(got2, ref2, rtol=1e-4, atol=1e-4), (got2, ref2)

    print("KERNEL_OK")
</pallas_src>

<mosaic_0001>
module attributes {stable_mosaic.version = 11 : i64} {
  func.func @_skipgram_dense_kernel(%arg0: i32, %arg1: memref<16x1xi32, #tpu.memory_space<vmem>>, %arg2: memref<16x1xi32, #tpu.memory_space<vmem>>, %arg3: memref<16x5xi32, #tpu.memory_space<vmem>>, %arg4: memref<128x128xf32, #tpu.memory_space<vmem>>, %arg5: memref<128x128xf32, #tpu.memory_space<vmem>>, %arg6: memref<1x8x128xf32, #tpu.memory_space<vmem>>) attributes {dimension_semantics = [#tpu.dimension_semantics<parallel>], iteration_bounds = array<i64: 1>, scalar_prefetch = 0 : i64, scratch_operands = 0 : i64, tpu.core_type = #tpu.core_type<tc>, window_params = [{transform_indices = @transform_0, window_bounds = array<i64: 16, 1>}, {transform_indices = @transform_1, window_bounds = array<i64: 16, 1>}, {transform_indices = @transform_2, window_bounds = array<i64: 16, 5>}, {pipeline_mode = #tpu.pipeline_mode<synchronous>, transform_indices = @transform_3, window_bounds = array<i64: 128, 128>}, {pipeline_mode = #tpu.pipeline_mode<synchronous>, transform_indices = @transform_4, window_bounds = array<i64: 128, 128>}, {transform_indices = @transform_5, window_bounds = array<i64: 1, 8, 128>}]} {
    %c16_i32 = arith.constant 16 : i32
    %0 = arith.muli %arg0, %c16_i32 : i32
    %1 = tpu.iota {dimensions = array<i32: 1>} : vector<16x128xi32>
    %c0 = arith.constant 0 : index
    %c0_0 = arith.constant 0 : index
    %2 = vector.load %arg1[%c0, %c0_0] : memref<16x1xi32, #tpu.memory_space<vmem>>, vector<16x1xi32>
    %3 = vector.broadcast %2 : vector<16x1xi32> to vector<16x128xi32>
    %4 = arith.cmpi eq, %3, %1 : vector<16x128xi32>
    %5 = arith.extui %4 : vector<16x128xi1> to vector<16x128xi32>
    %6 = arith.sitofp %5 : vector<16x128xi32> to vector<16x128xf32>
    %c0_1 = arith.constant 0 : index
    %c0_2 = arith.constant 0 : index
    %7 = vector.load %arg2[%c0_1, %c0_2] : memref<16x1xi32, #tpu.memory_space<vmem>>, vector<16x1xi32>
    %8 = vector.broadcast %7 : vector<16x1xi32> to vector<16x128xi32>
    %9 = arith.cmpi eq, %8, %1 : vector<16x128xi32>
    %10 = arith.extui %9 : vector<16x128xi1> to vector<16x128xi32>
    %11 = arith.sitofp %10 : vector<16x128xi32> to vector<16x128xf32>
    %cst = arith.constant 0.000000e+00 : f32
    %12 = vector.broadcast %cst : f32 to vector<16x128xf32>
    %c0_3 = arith.constant 0 : index
    %c0_4 = arith.constant 0 : index
    %13 = vector.load %arg3[%c0_3, %c0_4] : memref<16x5xi32, #tpu.memory_space<vmem>>, vector<16x1xi32>
    %14 = vector.broadcast %13 : vector<16x1xi32> to vector<16x128xi32>
    %15 = arith.cmpi eq, %14, %1 : vector<16x128xi32>
    %16 = arith.extui %15 : vector<16x128xi1> to vector<16x128xi32>
    %17 = arith.sitofp %16 : vector<16x128xi32> to vector<16x128xf32>
    %18 = arith.addf %12, %17 : vector<16x128xf32>
    %c0_5 = arith.constant 0 : index
    %c1 = arith.constant 1 : index
    %19 = vector.load %arg3[%c0_5, %c1] : memref<16x5xi32, #tpu.memory_space<vmem>>, vector<16x1xi32>
    %20 = vector.broadcast %19 : vector<16x1xi32> to vector<16x128xi32>
    %21 = arith.cmpi eq, %20, %1 : vector<16x128xi32>
    %22 = arith.extui %21 : vector<16x128xi1> to vector<16x128xi32>
    %23 = arith.sitofp %22 : vector<16x128xi32> to vector<16x128xf32>
    %24 = arith.addf %18, %23 : vector<16x128xf32>
    %c0_6 = arith.constant 0 : index
    %c2 = arith.constant 2 : index
    %25 = vector.load %arg3[%c0_6, %c2] : memref<16x5xi32, #tpu.memory_space<vmem>>, vector<16x1xi32>
    %26 = vector.broadcast %25 : vector<16x1xi32> to vector<16x128xi32>
    %27 = arith.cmpi eq, %26, %1 : vector<16x128xi32>
    %28 = arith.extui %27 : vector<16x128xi1> to vector<16x128xi32>
    %29 = arith.sitofp %28 : vector<16x128xi32> to vector<16x128xf32>
    %30 = arith.addf %24, %29 : vector<16x128xf32>
    %c0_7 = arith.constant 0 : index
    %c3 = arith.constant 3 : index
    %31 = vector.load %arg3[%c0_7, %c3] : memref<16x5xi32, #tpu.memory_space<vmem>>, vector<16x1xi32>
    %32 = vector.broadcast %31 : vector<16x1xi32> to vector<16x128xi32>
    %33 = arith.cmpi eq, %32, %1 : vector<16x128xi32>
    %34 = arith.extui %33 : vector<16x128xi1> to vector<16x128xi32>
    %35 = arith.sitofp %34 : vector<16x128xi32> to vector<16x128xf32>
    %36 = arith.addf %30, %35 : vector<16x128xf32>
    %c0_8 = arith.constant 0 : index
    %c4 = arith.constant 4 : index
    %37 = vector.load %arg3[%c0_8, %c4] : memref<16x5xi32, #tpu.memory_space<vmem>>, vector<16x1xi32>
    %38 = vector.broadcast %37 : vector<16x1xi32> to vector<16x128xi32>
    %39 = arith.cmpi eq, %38, %1 : vector<16x128xi32>
    %40 = arith.extui %39 : vector<16x128xi1> to vector<16x128xi32>
    %41 = arith.sitofp %40 : vector<16x128xi32> to vector<16x128xf32>
    %42 = arith.addf %36, %41 : vector<16x128xf32>
    %c0_9 = arith.constant 0 : index
    %c0_10 = arith.constant 0 : index
    %43 = vector.load %arg4[%c0_9, %c0_10] : memref<128x128xf32, #tpu.memory_space<vmem>>, vector<128x128xf32>
    %cst_11 = arith.constant dense<0.000000e+00> : vector<16x128xf32>
    %44 = tpu.matmul %6, %43, %cst_11 {dimension_numbers = #tpu.dot_dimension_numbers<[1], [0], [0], [1], [0, 0, 1, 1], [], []>} : vector<16x128xf32>, vector<128x128xf32>, vector<16x128xf32> -> vector<16x128xf32>
    %c0_12 = arith.constant 0 : index
    %c0_13 = arith.constant 0 : index
    %45 = vector.load %arg5[%c0_12, %c0_13] : memref<128x128xf32, #tpu.memory_space<vmem>>, vector<128x128xf32>
    %cst_14 = arith.constant dense<0.000000e+00> : vector<16x128xf32>
    %46 = tpu.matmul %11, %45, %cst_14 {dimension_numbers = #tpu.dot_dimension_numbers<[1], [0], [0], [1], [0, 0, 1, 1], [], []>} : vector<16x128xf32>, vector<128x128xf32>, vector<16x128xf32> -> vector<16x128xf32>
    %c0_15 = arith.constant 0 : index
    %c0_16 = arith.constant 0 : index
    %47 = vector.load %arg5[%c0_15, %c0_16] : memref<128x128xf32, #tpu.memory_space<vmem>>, vector<128x128xf32>
    %cst_17 = arith.constant dense<0.000000e+00> : vector<16x128xf32>
    %48 = tpu.matmul %42, %47, %cst_17 {dimension_numbers = #tpu.dot_dimension_numbers<[1], [0], [0], [1], [0, 0, 1, 1], [], []>} : vector<16x128xf32>, vector<128x128xf32>, vector<16x128xf32> -> vector<16x128xf32>
    %49 = arith.mulf %46, %44 : vector<16x128xf32>
    %cst_18 = arith.constant dense<0.000000e+00> : vector<16xf32>
    %50 = vector.multi_reduction <add>, %49, %cst_18 [1] : vector<16x128xf32> to vector<16xf32>
    %51 = vector.shape_cast %50 : vector<16xf32> to vector<16x1xf32>
    %52 = arith.mulf %48, %44 : vector<16x128xf32>
    %cst_19 = arith.constant dense<0.000000e+00> : vector<16xf32>
    %53 = vector.multi_reduction <add>, %52, %cst_19 [1] : vector<16x128xf32> to vector<16xf32>
    %54 = vector.shape_cast %53 : vector<16xf32> to vector<16x1xf32>
    %cst_20 = arith.constant 0.000000e+00 : f32
    %55 = vector.broadcast %cst_20 : f32 to vector<16x1xf32>
    %56 = arith.subf %55, %54 : vector<16x1xf32>
    %cst_21 = arith.constant 0.000000e+00 : f32
    %57 = vector.broadcast %cst_21 : f32 to vector<16x1xf32>
    %58 = arith.minimumf %51, %57 : vector<16x1xf32>
    %59 = math.absf %51 : vector<16x1xf32>
    %cst_22 = arith.constant 0.000000e+00 : f32
    %60 = vector.broadcast %cst_22 : f32 to vector<16x1xf32>
    %61 = arith.subf %60, %59 : vector<16x1xf32>
    %62 = math.exp %61 : vector<16x1xf32>
    %cst_23 = arith.constant 1.000000e+00 : f32
    %63 = vector.broadcast %cst_23 : f32 to vector<16x1xf32>
    %64 = arith.addf %63, %62 : vector<16x1xf32>
    %65 = math.log %64 : vector<16x1xf32>
    %66 = arith.subf %58, %65 : vector<16x1xf32>
    %cst_24 = arith.constant 0.000000e+00 : f32
    %67 = vector.broadcast %cst_24 : f32 to vector<16x1xf32>
    %68 = arith.minimumf %56, %67 : vector<16x1xf32>
    %69 = math.absf %56 : vector<16x1xf32>
    %cst_25 = arith.constant 0.000000e+00 : f32
    %70 = vector.broadcast %cst_25 : f32 to vector<16x1xf32>
    %71 = arith.subf %70, %69 : vector<16x1xf32>
    %72 = math.exp %71 : vector<16x1xf32>
    %cst_26 = arith.constant 1.000000e+00 : f32
    %73 = vector.broadcast %cst_26 : f32 to vector<16x1xf32>
    %74 = arith.addf %73, %72 : vector<16x1xf32>
    %75 = math.log %74 : vector<16x1xf32>
    %76 = arith.subf %68, %75 : vector<16x1xf32>
    %77 = tpu.iota {dimensions = array<i32: 0>} : vector<16x1xi32>
    %78 = vector.broadcast %0 : i32 to vector<16x1xi32>
    %79 = arith.addi %78, %77 : vector<16x1xi32>
    %c10_i32 = arith.constant 10 : i32
    %80 = vector.broadcast %c10_i32 : i32 to vector<16x1xi32>
    %81 = arith.cmpi slt, %79, %80 : vector<16x1xi32>
    %82 = arith.addf %66, %76 : vector<16x1xf32>
    %cst_27 = arith.constant 0.000000e+00 : f32
    %83 = vector.broadcast %cst_27 : f32 to vector<16x1xf32>
    %84 = arith.select %81, %82, %83 : vector<16x1xi1>, vector<16x1xf32>
    %cst_28 = arith.constant dense<0.000000e+00> : vector<1xf32>
    %85 = vector.multi_reduction <add>, %84, %cst_28 [0] : vector<16x1xf32> to vector<1xf32>
    %86 = vector.shape_cast %85 : vector<1xf32> to vector<1x1xf32>
    %87 = vector.shape_cast %86 : vector<1x1xf32> to vector<1x1x1xf32>
    %88 = vector.shape_cast %87 : vector<1x1x1xf32> to vector<1x1x1xf32>
    %89 = vector.broadcast %88 : vector<1x1x1xf32> to vector<1x8x128xf32>
    %c0_29 = arith.constant 0 : index
    %c0_30 = arith.constant 0 : index
    %c0_31 = arith.constant 0 : index
    %90 = vector.load %arg6[%c0_29, %c0_30, %c0_31] : memref<1x8x128xf32, #tpu.memory_space<vmem>>, vector<1x8x128xf32>
    tpu.vector_store %arg6[%c0_29, %c0_30, %c0_31], %89 {strides = array<i32>} : memref<1x8x128xf32, #tpu.memory_space<vmem>>, vector<1x8x128xf32>,
    return
  }
  func.func @transform_0(%arg0: i32) -> (i32, i32) {
    %c0_i32 = arith.constant 0 : i32
    %c0_i32_0 = arith.constant 0 : i32
    return %arg0, %c0_i32 : i32, i32
  }
  func.func @transform_1(%arg0: i32) -> (i32, i32) {
    %c0_i32 = arith.constant 0 : i32
    %c0_i32_0 = arith.constant 0 : i32
    return %arg0, %c0_i32 : i32, i32
  }
  func.func @transform_2(%arg0: i32) -> (i32, i32) {
    %c0_i32 = arith.constant 0 : i32
    %c0_i32_0 = arith.constant 0 : i32
    return %arg0, %c0_i32 : i32, i32
  }
  func.func @transform_3(%arg0: i32) -> (i32, i32) {
    %c0_i32 = arith.constant 0 : i32
    %c0_i32_0 = arith.constant 0 : i32
    %c0_i32_1 = arith.constant 0 : i32
    return %c0_i32, %c0_i32_0 : i32, i32
  }
  func.func @transform_4(%arg0: i32) -> (i32, i32) {
    %c0_i32 = arith.constant 0 : i32
    %c0_i32_0 = arith.constant 0 : i32
    %c0_i32_1 = arith.constant 0 : i32
    return %c0_i32, %c0_i32_0 : i32, i32
  }
  func.func @transform_5(%arg0: i32) -> (i32, i32, i32) {
    %c0_i32 = arith.constant 0 : i32
    %c0_i32_0 = arith.constant 0 : i32
    %c0_i32_1 = arith.constant 0 : i32
    return %arg0, %c0_i32, %c0_i32_0 : i32, i32, i32
  }
}

</mosaic_0001>

<llo_original>
// kernel: tpu_custom_call.1
$region0: #{tpu_custom_call.1}
  #allocation0 [shape = 'u32[]', space=smem, size = 0x4, offset = 0x4, fixed_abs, tag = 'smem constant byte address 0x4 - core index']
  #allocation1 [shape = 'u32[144,128]{1,0:T(1,128)}', space=vmem, size = 0x12000, scoped, tag = 'internal scratch']
  %s0 = inlined_call_operand.vmem [shape: s32[16,1], index: 0, kind: input, shape index: {}]
  %s1 = inlined_call_operand.vmem [shape: s32[16,1], index: 1, kind: input, shape index: {}]
  %s2 = inlined_call_operand.vmem [shape: s32[16,5], index: 2, kind: input, shape index: {}]
  %s3 = inlined_call_operand.hbm [shape: f32[128,128], index: 3, kind: input, shape index: {}]
  %s4 = inlined_call_operand.hbm [shape: f32[128,128], index: 4, kind: input, shape index: {}]
  %s5 = inlined_call_operand.hbm [shape: f32[1,8,128], index: 5, kind: output, shape index: {}]
  %s6 = sld [smem:[#allocation0]]
  $region38: #{tpu_custom_call.1} parent=0
    _
  %s8 = ssub.s32 1, %s6
  %s9 = scalar_select 0, %s8, %s6
  $region1: #{tpu_custom_call.1} parent=0
    #allocation2 [shape = 'u8[65536]{0}', space=vmem, size = 0x10000, scoped, tag = 'input window, operand 3, single buffered']
    #allocation3 [shape = 's32[1]{0}', space=sflag, size = 0x4, scoped, tag = 'scoped memory for tpu_custom_call.1']
    #allocation4 [shape = 's32[1]{0}', space=sflag, size = 0x4, scoped, tag = 'scoped memory for tpu_custom_call.1']
    #allocation5 [shape = 'u8[65536]{0}', space=vmem, size = 0x10000, scoped, tag = 'input window, operand 4, single buffered']
    #allocation6 [shape = 's32[1]{0}', space=sflag, size = 0x4, scoped, tag = 'scoped memory for tpu_custom_call.1']
    #allocation7 [shape = 'u8[4096]{0}', space=vmem, size = 0x1000, scoped, tag = 'output window, operand 0, single buffered']
    %10 = vsyncpa [#allocation3], 0
    %11 = vsyncpa [#allocation6], 0
    %12 = vsyncpa [#allocation4], 0
    // Predicated region
    $region2: #{tpu_custom_call.1} parent=1 // pred_check
      _
    $region3: #{tpu_custom_call.1} parent=1 // pred_check_branch
      %14 = sbr.rel (0) target = $region5
    $region4: #{tpu_custom_call.1} parent=1 // pred_region
      _
    $region5: #{tpu_custom_call.1} parent=1 // pred_fallthru
      _
    // Predicated region
    $region6: #{tpu_custom_call.1} parent=1 // pred_check
      _
    $region7: #{tpu_custom_call.1} parent=1 // pred_check_branch
      %16 = sbr.rel (0) target = $region9
    $region8: #{tpu_custom_call.1} parent=1 // pred_region
      _
    $region9: #{tpu_custom_call.1} parent=1 // pred_fallthru
      _
    // Predicated region
    $region10: #{tpu_custom_call.1} parent=1 // pred_check
      _
    $region11: #{tpu_custom_call.1} parent=1 // pred_check_branch
      %18 = sbr.rel (0) target = $region13
    $region12: #{tpu_custom_call.1} parent=1 // pred_region
      _
    $region13: #{tpu_custom_call.1} parent=1 // pred_fallthru
      _
    // Predicated region
    $region14: #{tpu_custom_call.1} parent=1 // pred_check
      _
    $region15: #{tpu_custom_call.1} parent=1 // pred_check_branch
      %20 = sbr.rel (0) target = $region17
    $region16: #{tpu_custom_call.1} parent=1 // pred_region
      %s22 = ssub.s32 2048, 2048
      %23 = vsyncadd [#allocation3], %s22
      %s24 = sshll.u32 [#allocation2], 4
      %s25 = int_to_ptr.vmem [resolvable:$true] %s24
      %30 = dma.hbm_to_vmem [thread:$0]  %s3, 2048, %s25, [#allocation3], 128, 128, 8
    $region17: #{tpu_custom_call.1} parent=1 // pred_fallthru
      _
    // Predicated region
    $region18: #{tpu_custom_call.1} parent=1 // pred_check
      _
    $region19: #{tpu_custom_call.1} parent=1 // pred_check_branch
      %32 = sbr.rel (0) target = $region21
    $region20: #{tpu_custom_call.1} parent=1 // pred_region
      %s34 = ssub.s32 2048, 2048
      %35 = vsyncadd [#allocation6], %s34
      %s36 = sshll.u32 [#allocation5], 4
      %s37 = int_to_ptr.vmem [resolvable:$true] %s36
      %42 = dma.hbm_to_vmem [thread:$0]  %s4, 2048, %s37, [#allocation6], 128, 128, 8
    $region21: #{tpu_custom_call.1} parent=1 // pred_fallthru
      _
    // Predicated region
    $region22: #{tpu_custom_call.1} parent=1 // pred_check
      _
    $region23: #{tpu_custom_call.1} parent=1 // pred_check_branch
      %44 = sbr.rel (0) target = $region25
    $region24: #{tpu_custom_call.1} parent=1 // pred_region
      %45 = dma.done [#allocation3], 2048
    $region25: #{tpu_custom_call.1} parent=1 // pred_fallthru
      _
    // Predicated region
    $region26: #{tpu_custom_call.1} parent=1 // pred_check
      _
    $region27: #{tpu_custom_call.1} parent=1 // pred_check_branch
      %47 = sbr.rel (0) target = $region29
    $region28: #{tpu_custom_call.1} parent=1 // pred_region
      %48 = dma.done [#allocation6], 2048
    $region29: #{tpu_custom_call.1} parent=1 // pred_fallthru
      _
    %s49 = smul.u32 0, 16
    %v50 = vlaneseq
    %v51 = vand.u32 %v50, 127
    %v52 = vld [vmem:[%s0] sm:$0xff]
    %v53 = vld [vmem:[%s0 + $0x8] sm:$0xff]
    %54 = vset.pattern.permute.xlu0 0
    %55 = vperm.xlu0 %54, %v52
    %v56 = vpop.permute.xlu0 %55
    %57 = vset.pattern.permute.xlu0 0
    %58 = vperm.xlu0 %57, %v53
    %v59 = vpop.permute.xlu0 %58
    %vm60 = vcmp.eq.s32.totalorder %v56, %v51
    %vm61 = vcmp.eq.s32.totalorder %v59, %v51
    %v62 = vsel %vm60, 1, 0
    %v63 = vsel %vm61, 1, 0
    %v64 = vcvt.s32.f32 %v62
    %v65 = vcvt.s32.f32 %v63
    %v66 = vld [vmem:[%s1] sm:$0xff]
    %v67 = vld [vmem:[%s1 + $0x8] sm:$0xff]
    %68 = vset.pattern.permute.xlu0 0
    %69 = vperm.xlu0 %68, %v66
    %v70 = vpop.permute.xlu0 %69
    %71 = vset.pattern.permute.xlu0 0
    %72 = vperm.xlu0 %71, %v67
    %v73 = vpop.permute.xlu0 %72
    %vm74 = vcmp.eq.s32.totalorder %v70, %v51
    %vm75 = vcmp.eq.s32.totalorder %v73, %v51
    %v76 = vsel %vm74, 1, 0
    %v77 = vsel %vm75, 1, 0
    %v78 = vcvt.s32.f32 %v76
    %v79 = vcvt.s32.f32 %v77
    %v80 = vld [vmem:[%s2] sm:$0xff]
    %v81 = vld [vmem:[%s2 + $0x8] sm:$0xff]
    %82 = vset.pattern.permute.xlu0 0
    %83 = vperm.xlu0 %82, %v80
    %v84 = vpop.permute.xlu0 %83
    %85 = vset.pattern.permute.xlu0 0
    %86 = vperm.xlu0 %85, %v81
    %v87 = vpop.permute.xlu0 %86
    %vm88 = vcmp.eq.s32.totalorder %v84, %v51
    %vm89 = vcmp.eq.s32.totalorder %v87, %v51
    %v90 = vsel %vm88, 1, 0
    %v91 = vsel %vm89, 1, 0
    %v92 = vcvt.s32.f32 %v90
    %v93 = vcvt.s32.f32 %v91
    %v94 = vadd.f32 %v92, 0.0
    %v95 = vadd.f32 %v93, 0.0
    %96 = vset.pattern.permute.xlu0 1
    %97 = vperm.xlu0 %96, %v80
    %v98 = vpop.permute.xlu0 %97
    %99 = vset.pattern.permute.xlu0 1
    %100 = vperm.xlu0 %99, %v81
    %v101 = vpop.permute.xlu0 %100
    %vm102 = vcmp.eq.s32.totalorder %v98, %v51
    %vm103 = vcmp.eq.s32.totalorder %v101, %v51
    %v104 = vsel %vm102, 1, 0
    %v105 = vsel %vm103, 1, 0
    %v106 = vcvt.s32.f32 %v104
    %v107 = vcvt.s32.f32 %v105
    %v108 = vadd.f32 %v94, %v106
    %v109 = vadd.f32 %v95, %v107
    %110 = vset.pattern.permute.xlu0 2
    %111 = vperm.xlu0 %110, %v80
    %v112 = vpop.permute.xlu0 %111
    %113 = vset.pattern.permute.xlu0 2
    %114 = vperm.xlu0 %113, %v81
    %v115 = vpop.permute.xlu0 %114
    %vm116 = vcmp.eq.s32.totalorder %v112, %v51
    %vm117 = vcmp.eq.s32.totalorder %v115, %v51
    %v118 = vsel %vm116, 1, 0
    %v119 = vsel %vm117, 1, 0
    %v120 = vcvt.s32.f32 %v118
    %v121 = vcvt.s32.f32 %v119
    %v122 = vadd.f32 %v108, %v120
    %v123 = vadd.f32 %v109, %v121
    %124 = vset.pattern.permute.xlu0 3
    %125 = vperm.xlu0 %124, %v80
    %v126 = vpop.permute.xlu0 %125
    %127 = vset.pattern.permute.xlu0 3
    %128 = vperm.xlu0 %127, %v81
    %v129 = vpop.permute.xlu0 %128
    %vm130 = vcmp.eq.s32.totalorder %v126, %v51
    %vm131 = vcmp.eq.s32.totalorder %v129, %v51
    %v132 = vsel %vm130, 1, 0
    %v133 = vsel %vm131, 1, 0
    %v134 = vcvt.s32.f32 %v132
    %v135 = vcvt.s32.f32 %v133
    %v136 = vadd.f32 %v122, %v134
    %v137 = vadd.f32 %v123, %v135
    %138 = vset.pattern.permute.xlu0 4
    %139 = vperm.xlu0 %138, %v80
    %v140 = vpop.permute.xlu0 %139
    %141 = vset.pattern.permute.xlu0 4
    %142 = vperm.xlu0 %141, %v81
    %v143 = vpop.permute.xlu0 %142
    %vm144 = vcmp.eq.s32.totalorder %v140, %v51
    %vm145 = vcmp.eq.s32.totalorder %v143, %v51
    %v146 = vsel %vm144, 1, 0
    %v147 = vsel %vm145, 1, 0
    %v148 = vcvt.s32.f32 %v146
    %v149 = vcvt.s32.f32 %v147
    %v150 = vadd.f32 %v136, %v148
    %v151 = vadd.f32 %v137, %v149
    %v152 = vld [vmem:[#allocation2] sm:$0xff]
    %v153 = vld [vmem:[#allocation2 + $0x8] sm:$0xff]
    %v154 = vld [vmem:[#allocation2 + $0x10] sm:$0xff]
    %v155 = vld [vmem:[#allocation2 + $0x18] sm:$0xff]
    %v156 = vld [vmem:[#allocation2 + $0x20] sm:$0xff]
    %v157 = vld [vmem:[#allocation2 + $0x28] sm:$0xff]
    %v158 = vld [vmem:[#allocation2 + $0x30] sm:$0xff]
    %v159 = vld [vmem:[#allocation2 + $0x38] sm:$0xff]
    %v160 = vld [vmem:[#allocation2 + $0x40] sm:$0xff]
    %v161 = vld [vmem:[#allocation2 + $0x48] sm:$0xff]
    %v162 = vld [vmem:[#allocation2 + $0x50] sm:$0xff]
    %v163 = vld [vmem:[#allocation2 + $0x58] sm:$0xff]
    %v164 = vld [vmem:[#allocation2 + $0x60] sm:$0xff]
    %v165 = vld [vmem:[#allocation2 + $0x68] sm:$0xff]
    %v166 = vld [vmem:[#allocation2 + $0x70] sm:$0xff]
    %v167 = vld [vmem:[#allocation2 + $0x78] sm:$0xff]
    %168 = vmatprep.subr.mxu0 0.0
    %169 = vmatpush1.msra.mxu0 %v152
    %170 = vmatprep.subr.mxu0 0.0
    %171 = vmatpush1.msra.mxu0 %v153
    %172 = vmatprep.subr.mxu0 0.0
    %173 = vmatpush1.msra.mxu0 %v154
    %174 = vmatprep.subr.mxu0 0.0
    %175 = vmatpush1.msra.mxu0 %v155
    %176 = vmatprep.subr.mxu0 0.0
    %177 = vmatpush1.msra.mxu0 %v156
    %178 = vmatprep.subr.mxu0 0.0
    %179 = vmatpush1.msra.mxu0 %v157
    %180 = vmatprep.subr.mxu0 0.0
    %181 = vmatpush1.msra.mxu0 %v158
    %182 = vmatprep.subr.mxu0 0.0
    %183 = vmatpush1.msra.mxu0 %v159
    %184 = vmatprep.subr.mxu0 0.0
    %185 = vmatpush1.msra.mxu0 %v160
    %186 = vmatprep.subr.mxu0 0.0
    %187 = vmatpush1.msra.mxu0 %v161
    %188 = vmatprep.subr.mxu0 0.0
    %189 = vmatpush1.msra.mxu0 %v162
    %190 = vmatprep.subr.mxu0 0.0
    %191 = vmatpush1.msra.mxu0 %v163
    %192 = vmatprep.subr.mxu0 0.0
    %193 = vmatpush1.msra.mxu0 %v164
    %194 = vmatprep.subr.mxu0 0.0
    %195 = vmatpush1.msra.mxu0 %v165
    %196 = vmatprep.subr.mxu0 0.0
    %197 = vmatpush1.msra.mxu0 %v166
    %198 = vmatprep.subr.mxu0 0.0
    %199 = vmatpush1.msra.mxu0 %v167
    %200 = vmatprep.subr.mxu0 0.0
    %201 = vmatpush1.msra.mxu0 0.0
    %202 = vmatprep.subr.mxu0 0.0
    %203 = vmatpush1.msra.mxu0 0.0
    %204 = vmatprep.subr.mxu0 0.0
    %205 = vmatpush1.msra.mxu0 0.0
    %206 = vmatprep.subr.mxu0 0.0
    %207 = vmatpush1.msra.mxu0 0.0
    %208 = vmatprep.subr.mxu0 0.0
    %209 = vmatpush1.msra.mxu0 0.0
    %210 = vmatprep.subr.mxu0 0.0
    %211 = vmatpush1.msra.mxu0 0.0
    %212 = vmatprep.subr.mxu0 0.0
    %213 = vmatpush1.msra.mxu0 0.0
    %214 = vmatprep.subr.mxu0 0.0
    %215 = vmatpush1.msra.mxu0 0.0
    %216 = vmatprep.subr.mxu0 0.0
    %217 = vmatpush1.msra.mxu0 0.0
    %218 = vmatprep.subr.mxu0 0.0
    %219 = vmatpush1.msra.mxu0 0.0
    %220 = vmatprep.subr.mxu0 0.0
    %221 = vmatpush1.msra.mxu0 0.0
    %222 = vmatprep.subr.mxu0 0.0
    %223 = vmatpush1.msra.mxu0 0.0
    %224 = vmatprep.subr.mxu0 0.0
    %225 = vmatpush1.msra.mxu0 0.0
    %226 = vmatprep.subr.mxu0 0.0
    %227 = vmatpush1.msra.mxu0 0.0
    %228 = vmatprep.subr.mxu0 0.0
    %229 = vmatpush1.msra.mxu0 0.0
    %230 = vmatprep.subr.mxu0 0.0
    %231 = vmatpush1.msra.mxu0 0.0
    %232 = vmatprep.mubr.f32.mxu0 0.0
    %233 = vmatmul.mubr.f32.gmra.mrb[0].mxu0 %v64
    %v234 = vpop.f32.mrb[0].mxu0
    %v235 = vadd.f32 0.0, %v234
    %v236 = vpop.f32.mrb[0].mxu0
    %237 = vmatprep.mubr.f32.mxu0 0.0
    %238 = vmatmul.mubr.f32.gmra.mrb[0].mxu0 %v65
    %v239 = vpop.f32.mrb[0].mxu0
    %v240 = vadd.f32 0.0, %v239
    %v241 = vpop.f32.mrb[0].mxu0
    %242 = vdwg.mxu0
    %v243 = vld [vmem:[#allocation5] sm:$0xff]
    %v244 = vld [vmem:[#allocation5 + $0x8] sm:$0xff]
    %v245 = vld [vmem:[#allocation5 + $0x10] sm:$0xff]
    %v246 = vld [vmem:[#allocation5 + $0x18] sm:$0xff]
    %v247 = vld [vmem:[#allocation5 + $0x20] sm:$0xff]
    %v248 = vld [vmem:[#allocation5 + $0x28] sm:$0xff]
    %v249 = vld [vmem:[#allocation5 + $0x30] sm:$0xff]
    %v250 = vld [vmem:[#allocation5 + $0x38] sm:$0xff]
    %v251 = vld [vmem:[#allocation5 + $0x40] sm:$0xff]
    %v252 = vld [vmem:[#allocation5 + $0x48] sm:$0xff]
    %v253 = vld [vmem:[#allocation5 + $0x50] sm:$0xff]
    %v254 = vld [vmem:[#allocation5 + $0x58] sm:$0xff]
    %v255 = vld [vmem:[#allocation5 + $0x60] sm:$0xff]
    %v256 = vld [vmem:[#allocation5 + $0x68] sm:$0xff]
    %v257 = vld [vmem:[#allocation5 + $0x70] sm:$0xff]
    %v258 = vld [vmem:[#allocation5 + $0x78] sm:$0xff]
    %259 = vmatprep.subr.mxu0 0.0
    %260 = vmatpush1.msra.mxu0 %v243
    %261 = vmatprep.subr.mxu0 0.0
    %262 = vmatpush1.msra.mxu0 %v244
    %263 = vmatprep.subr.mxu0 0.0
    %264 = vmatpush1.msra.mxu0 %v245
    %265 = vmatprep.subr.mxu0 0.0
    %266 = vmatpush1.msra.mxu0 %v246
    %267 = vmatprep.subr.mxu0 0.0
    %268 = vmatpush1.msra.mxu0 %v247
    %269 = vmatprep.subr.mxu0 0.0
    %270 = vmatpush1.msra.mxu0 %v248
    %271 = vmatprep.subr.mxu0 0.0
    %272 = vmatpush1.msra.mxu0 %v249
    %273 = vmatprep.subr.mxu0 0.0
    %274 = vmatpush1.msra.mxu0 %v250
    %275 = vmatprep.subr.mxu0 0.0
    %276 = vmatpush1.msra.mxu0 %v251
    %277 = vmatprep.subr.mxu0 0.0
    %278 = vmatpush1.msra.mxu0 %v252
    %279 = vmatprep.subr.mxu0 0.0
    %280 = vmatpush1.msra.mxu0 %v253
    %281 = vmatprep.subr.mxu0 0.0
    %282 = vmatpush1.msra.mxu0 %v254
    %283 = vmatprep.subr.mxu0 0.0
    %284 = vmatpush1.msra.mxu0 %v255
    %285 = vmatprep.subr.mxu0 0.0
    %286 = vmatpush1.msra.mxu0 %v256
    %287 = vmatprep.subr.mxu0 0.0
    %288 = vmatpush1.msra.mxu0 %v257
    %289 = vmatprep.subr.mxu0 0.0
    %290 = vmatpush1.msra.mxu0 %v258
    %291 = vmatprep.subr.mxu0 0.0
    %292 = vmatpush1.msra.mxu0 0.0
    %293 = vmatprep.subr.mxu0 0.0
    %294 = vmatpush1.msra.mxu0 0.0
    %295 = vmatprep.subr.mxu0 0.0
    %296 = vmatpush1.msra.mxu0 0.0
    %297 = vmatprep.subr.mxu0 0.0
    %298 = vmatpush1.msra.mxu0 0.0
    %299 = vmatprep.subr.mxu0 0.0
    %300 = vmatpush1.msra.mxu0 0.0
    %301 = vmatprep.subr.mxu0 0.0
    %302 = vmatpush1.msra.mxu0 0.0
    %303 = vmatprep.subr.mxu0 0.0
    %304 = vmatpush1.msra.mxu0 0.0
    %305 = vmatprep.subr.mxu0 0.0
    %306 = vmatpush1.msra.mxu0 0.0
    %307 = vmatprep.subr.mxu0 0.0
    %308 = vmatpush1.msra.mxu0 0.0
    %309 = vmatprep.subr.mxu0 0.0
    %310 = vmatpush1.msra.mxu0 0.0
    %311 = vmatprep.subr.mxu0 0.0
    %312 = vmatpush1.msra.mxu0 0.0
    %313 = vmatprep.subr.mxu0 0.0
    %314 = vmatpush1.msra.mxu0 0.0
    %315 = vmatprep.subr.mxu0 0.0
    %316 = vmatpush1.msra.mxu0 0.0
    %317 = vmatprep.subr.mxu0 0.0
    %318 = vmatpush1.msra.mxu0 0.0
    %319 = vmatprep.subr.mxu0 0.0
    %320 = vmatpush1.msra.mxu0 0.0
    %321 = vmatprep.subr.mxu0 0.0
    %322 = vmatpush1.msra.mxu0 0.0
    %323 = vmatprep.mubr.f32.mxu0 0.0
    %324 = vmatmul.mubr.f32.gmra.mrb[0].mxu0 %v78
    %v325 = vpop.f32.mrb[0].mxu0
    %v326 = vadd.f32 0.0, %v325
    %v327 = vpop.f32.mrb[0].mxu0
    %328 = vmatprep.mubr.f32.mxu0 0.0
    %329 = vmatmul.mubr.f32.gmra.mrb[0].mxu0 %v79
    %v330 = vpop.f32.mrb[0].mxu0
    %v331 = vadd.f32 0.0, %v330
    %v332 = vpop.f32.mrb[0].mxu0
    %333 = vdwg.mxu0
    %334 = vmatprep.subr.mxu0 0.0
    %335 = vmatpush1.msra.mxu0 %v243
    %336 = vmatprep.subr.mxu0 0.0
    %337 = vmatpush1.msra.mxu0 %v244
    %338 = vmatprep.subr.mxu0 0.0
    %339 = vmatpush1.msra.mxu0 %v245
    %340 = vmatprep.subr.mxu0 0.0
    %341 = vmatpush1.msra.mxu0 %v246
    %342 = vmatprep.subr.mxu0 0.0
    %343 = vmatpush1.msra.mxu0 %v247
    %344 = vmatprep.subr.mxu0 0.0
    %345 = vmatpush1.msra.mxu0 %v248
    %346 = vmatprep.subr.mxu0 0.0
    %347 = vmatpush1.msra.mxu0 %v249
    %348 = vmatprep.subr.mxu0 0.0
    %349 = vmatpush1.msra.mxu0 %v250
    %350 = vmatprep.subr.mxu0 0.0
    %351 = vmatpush1.msra.mxu0 %v251
    %352 = vmatprep.subr.mxu0 0.0
    %353 = vmatpush1.msra.mxu0 %v252
    %354 = vmatprep.subr.mxu0 0.0
    %355 = vmatpush1.msra.mxu0 %v253
    %356 = vmatprep.subr.mxu0 0.0
    %357 = vmatpush1.msra.mxu0 %v254
    %358 = vmatprep.subr.mxu0 0.0
    %359 = vmatpush1.msra.mxu0 %v255
    %360 = vmatprep.subr.mxu0 0.0
    %361 = vmatpush1.msra.mxu0 %v256
    %362 = vmatprep.subr.mxu0 0.0
    %363 = vmatpush1.msra.mxu0 %v257
    %364 = vmatprep.subr.mxu0 0.0
    %365 = vmatpush1.msra.mxu0 %v258
    %366 = vmatprep.subr.mxu0 0.0
    %367 = vmatpush1.msra.mxu0 0.0
    %368 = vmatprep.subr.mxu0 0.0
    %369 = vmatpush1.msra.mxu0 0.0
    %370 = vmatprep.subr.mxu0 0.0
    %371 = vmatpush1.msra.mxu0 0.0
    %372 = vmatprep.subr.mxu0 0.0
    %373 = vmatpush1.msra.mxu0 0.0
    %374 = vmatprep.subr.mxu0 0.0
    %375 = vmatpush1.msra.mxu0 0.0
    %376 = vmatprep.subr.mxu0 0.0
    %377 = vmatpush1.msra.mxu0 0.0
    %378 = vmatprep.subr.mxu0 0.0
    %379 = vmatpush1.msra.mxu0 0.0
    %380 = vmatprep.subr.mxu0 0.0
    %381 = vmatpush1.msra.mxu0 0.0
    %382 = vmatprep.subr.mxu0 0.0
    %383 = vmatpush1.msra.mxu0 0.0
    %384 = vmatprep.subr.mxu0 0.0
    %385 = vmatpush1.msra.mxu0 0.0
    %386 = vmatprep.subr.mxu0 0.0
    %387 = vmatpush1.msra.mxu0 0.0
    %388 = vmatprep.subr.mxu0 0.0
    %389 = vmatpush1.msra.mxu0 0.0
    %390 = vmatprep.subr.mxu0 0.0
    %391 = vmatpush1.msra.mxu0 0.0
    %392 = vmatprep.subr.mxu0 0.0
    %393 = vmatpush1.msra.mxu0 0.0
    %394 = vmatprep.subr.mxu0 0.0
    %395 = vmatpush1.msra.mxu0 0.0
    %396 = vmatprep.subr.mxu0 0.0
    %397 = vmatpush1.msra.mxu0 0.0
    %398 = vmatprep.mubr.f32.mxu0 0.0
    %399 = vmatmul.mubr.f32.gmra.mrb[0].mxu0 %v150
    %v400 = vpop.f32.mrb[0].mxu0
    %v401 = vadd.f32 0.0, %v400
    %v402 = vpop.f32.mrb[0].mxu0
    %403 = vmatprep.mubr.f32.mxu0 0.0
    %404 = vmatmul.mubr.f32.gmra.mrb[0].mxu0 %v151
    %v405 = vpop.f32.mrb[0].mxu0
    %v406 = vadd.f32 0.0, %v405
    %v407 = vpop.f32.mrb[0].mxu0
    %408 = vdwg.mxu0
    %v409 = vmul.f32 %v326, %v235
    %v410 = vmul.f32 %v331, %v240
    %411 = vadd.xlane.f32.xlu0 %v409
    %v412 = vpop.xlane.xlu0 %411
    %413 = vadd.xlane.f32.xlu0 %v410
    %v414 = vpop.xlane.xlu0 %413
    %v415 = vmul.f32 %v401, %v235
    %v416 = vmul.f32 %v406, %v240
    %417 = vadd.xlane.f32.xlu0 %v415
    %v418 = vpop.xlane.xlu0 %417
    %419 = vadd.xlane.f32.xlu0 %v416
    %v420 = vpop.xlane.xlu0 %419
    %v421 = vsub.f32 0.0, %v418
    %v422 = vsub.f32 0.0, %v420
    %v423 = vmin.f32 %v412, 0.0
    %v424 = vmin.f32 %v414, 0.0
    %v425 = vand.u32 2147483647, %v412
    %v426 = vand.u32 2147483647, %v414
    %v427 = vsub.f32 0.0, %v425
    %v428 = vsub.f32 0.0, %v426
    %v429 = vmul.f32 %v427, 1.442695
    %v430 = vpow.pop %v429
    %v431 = vmul.f32 %v428, 1.442695
    %v432 = vpow.pop %v431
    %v433 = vadd.f32 %v430, 1.0
    %v434 = vadd.f32 %v432, 1.0
    %v435 = vlog2.pop %v433
    %v436 = vmul.f32 %v435, 0.6931472
    %v437 = vlog2.pop %v434
    %v438 = vmul.f32 %v437, 0.6931472
    %v439 = vsub.f32 %v423, %v436
    %v440 = vsub.f32 %v424, %v438
    %v441 = vmin.f32 %v421, 0.0
    %v442 = vmin.f32 %v422, 0.0
    %v443 = vand.u32 2147483647, %v421
    %v444 = vand.u32 2147483647, %v422
    %v445 = vsub.f32 0.0, %v443
    %v446 = vsub.f32 0.0, %v444
    %v447 = vmul.f32 %v445, 1.442695
    %v448 = vpow.pop %v447
    %v449 = vmul.f32 %v446, 1.442695
    %v450 = vpow.pop %v449
    %v451 = vadd.f32 %v448, 1.0
    %v452 = vadd.f32 %v450, 1.0
    %v453 = vlog2.pop %v451
    %v454 = vmul.f32 %v453, 0.6931472
    %v455 = vlog2.pop %v452
    %v456 = vmul.f32 %v455, 0.6931472
    %v457 = vsub.f32 %v441, %v454
    %v458 = vsub.f32 %v442, %v456
    %v459 = vlaneseq
    %v460 = vshrl.u32 %v459, 7
    %v461 = vadd.s32 %v460, 8
    %v462 = vstv %s49
    %v463 = vadd.s32 %v462, %v460
    %v464 = vadd.s32 %v462, %v461
    %vm465 = vcmp.lt.s32.totalorder %v463, 10
    %vm466 = vcmp.lt.s32.totalorder %v464, 10
    %v467 = vadd.f32 %v439, %v457
    %v468 = vadd.f32 %v440, %v458
    %v469 = vsel %vm465, %v467, 0.0
    %v470 = vsel %vm466, %v468, 0.0
    %v471 = vadd.f32 %v469, %v470
    %v472 = vrot.slane %v471, 4
    %v473 = vadd.f32 %v471, %v472
    %v474 = vrot.slane %v473, 2
    %v475 = vadd.f32 %v473, %v474
    %v476 = vrot.slane %v475, 1
    %v477 = vadd.f32 %v475, %v476
    %478 = vst [vmem:[#allocation7] sm:$0xff] %v477
    // Predicated region
    $region30: #{tpu_custom_call.1} parent=1 // pred_check
      _
    $region31: #{tpu_custom_call.1} parent=1 // pred_check_branch
      %480 = sbr.rel (0) target = $region33
    $region32: #{tpu_custom_call.1} parent=1 // pred_region
      %s482 = ssub.s32 128, 128
      %483 = vsyncadd [#allocation4], %s482
      %s485 = sshll.u32 [#allocation7], 4
      %s486 = int_to_ptr.vmem [resolvable:$true] %s485
      %488 = dma.vmem_to_hbm [thread:$0]  %s486, 128, %s5, [#allocation4]
    $region33: #{tpu_custom_call.1} parent=1 // pred_fallthru
      _
    // Predicated region
    $region34: #{tpu_custom_call.1} parent=1 // pred_check
      _
    $region35: #{tpu_custom_call.1} parent=1 // pred_check_branch
      %490 = sbr.rel (0) target = $region37
    $region36: #{tpu_custom_call.1} parent=1 // pred_region
      %491 = dma.done [#allocation4], 128
    $region37: #{tpu_custom_call.1} parent=1 // pred_fallthru
      _
    %492 = vsyncpa [#allocation3], 1
    %493 = vsyncpa [#allocation6], 1
    %494 = vsyncpa [#allocation4], 1

</llo_original>
